<compile_context>
chip_gen: v7x
topology: tpu7x:2x2x1
jax: 0.10.0
libtpu: 0.0.40
codegen_flags: <defaults>
</compile_context>

<pallas_src>
import math

import jax
import jax.numpy as jnp
from jax.experimental import pallas as pl
from jax.experimental.pallas import tpu as pltpu


def _build_pe(d_model: int, max_len: int = 16) -> jnp.ndarray:
    """sin/cos positional-encoding table, shape (max_len, d_model), float32."""
    assert d_model % 2 == 0, "PositionalEncoding requires even d_model"
    position = jnp.arange(0, max_len, dtype=jnp.float32)[:, None]          # (L, 1)
    div_term = jnp.exp(
        jnp.arange(0, d_model, 2, dtype=jnp.float32) * (-math.log(10000.0) / d_model)
    )                                                                       # (D/2,)
    args = position * div_term                                              # (L, D/2)
    pe = jnp.zeros((max_len, d_model), dtype=jnp.float32)
    pe = pe.at[:, 0::2].set(jnp.sin(args))
    pe = pe.at[:, 1::2].set(jnp.cos(args))
    return pe


def _pos_enc_kernel(x_ref, pe_ref, o_ref):
    # x_ref : (TB, S*D)  current batch tile, lane-dense
    # pe_ref: (1,  S*D)  VMEM-resident (same block every grid step)
    # o_ref : (TB, S*D)  aliased with x's HBM buffer
    o_ref[...] = x_ref[...] + pe_ref[...]        # row-broadcast add on the VPU


def _pick_batch_tile(batch: int, row_bytes: int,
                     target_block_bytes: int = 1 << 20) -> int:
    """Rows per grid step: ~1 MiB blocks; multiple of 8 or the full batch."""
    tb = max(1, target_block_bytes // max(row_bytes, 1))
    if tb >= batch:
        return batch
    tb = max(8, (tb // 8) * 8)       # sublane (second-minor) block dim must be /8
    return batch if tb >= batch else tb


@jax.jit
def positional_encoding(x: jnp.ndarray, pe: jnp.ndarray) -> jnp.ndarray:
    """x: (B, S, D); pe: (max_len, D). Returns x + pe[None, :S, :]."""
    B, S, D = x.shape
    SD = S * D

    # Glue (outside the kernel): static slice of the table, flatten to a
    # lane-dense 2-D layout, match x's dtype (keeps bf16 traffic in bf16).
    pe_row = pe[:S, :].reshape(1, SD).astype(x.dtype)
    x2d = x.reshape(B, SD)

    tb = _pick_batch_tile(B, SD * x.dtype.itemsize)
    grid = (pl.cdiv(B, tb),)

    out2d = pl.pallas_call(
        _pos_enc_kernel,
        out_shape=jax.ShapeDtypeStruct((B, SD), x.dtype),
        grid_spec=pltpu.PrefetchScalarGridSpec(
            num_scalar_prefetch=0,
            grid=grid,
            in_specs=[
                pl.BlockSpec((tb, SD), lambda i: (i, 0)),   # x batch tile
                pl.BlockSpec((1, SD), lambda i: (0, 0)),    # pe, stays resident
            ],
            out_specs=pl.BlockSpec((tb, SD), lambda i: (i, 0)),
        ),
        # In-place add: output reuses x's buffer (no extra HBM allocation).
        input_output_aliases={0: 0},
        compiler_params=pltpu.CompilerParams(
            dimension_semantics=("parallel",),
            vmem_limit_bytes=32 * 1024 * 1024,
        ),
    )(x2d, pe_row)

    return out2d.reshape(B, S, D)


if __name__ == "__main__":
    B, S, D = 2, 8, 32          # batch=2, seq=8, d_model=32
    MAX_LEN = 16

    key = jax.random.PRNGKey(0)
    x = jax.random.normal(key, (B, S, D), dtype=jnp.float32)

    pe = _build_pe(D, MAX_LEN)

    out = positional_encoding(x, pe)
    out = jax.block_until_ready(out)

    # reference check in plain JAX (mirrors the PyTorch forward)
    ref = x + pe[None, :S, :]
    assert out.shape == (B, S, D)
    assert jnp.allclose(out, ref, atol=1e-6, rtol=1e-6), "mismatch vs reference"

    print("KERNEL_OK")
</pallas_src>

<mosaic_0001>
module attributes {stable_mosaic.version = 11 : i64} {
  func.func @_pos_enc_kernel(%arg0: i32, %arg1: memref<2x256xf32, #tpu.memory_space<vmem>>, %arg2: memref<1x256xf32, #tpu.memory_space<vmem>>, %arg3: memref<2x256xf32, #tpu.memory_space<vmem>>) attributes {dimension_semantics = [#tpu.dimension_semantics<parallel>], iteration_bounds = array<i64: 1>, scalar_prefetch = 0 : i64, scratch_operands = 0 : i64, tpu.core_type = #tpu.core_type<tc>, window_params = [{transform_indices = @transform_0, window_bounds = array<i64: 2, 256>}, {pipeline_mode = #tpu.pipeline_mode<synchronous>, transform_indices = @transform_1, window_bounds = array<i64: 1, 256>}, {transform_indices = @transform_2, window_bounds = array<i64: 2, 256>}]} {
    %c0 = arith.constant 0 : index
    %c0_0 = arith.constant 0 : index
    %0 = vector.load %arg1[%c0, %c0_0] : memref<2x256xf32, #tpu.memory_space<vmem>>, vector<2x256xf32>
    %c0_1 = arith.constant 0 : index
    %c0_2 = arith.constant 0 : index
    %1 = vector.load %arg2[%c0_1, %c0_2] : memref<1x256xf32, #tpu.memory_space<vmem>>, vector<1x256xf32>
    %2 = vector.broadcast %1 : vector<1x256xf32> to vector<2x256xf32>
    %3 = arith.addf %0, %2 : vector<2x256xf32>
    %c0_3 = arith.constant 0 : index
    %c0_4 = arith.constant 0 : index
    %4 = vector.load %arg3[%c0_3, %c0_4] : memref<2x256xf32, #tpu.memory_space<vmem>>, vector<2x256xf32>
    tpu.vector_store %arg3[%c0_3, %c0_4], %3 {strides = array<i32>} : memref<2x256xf32, #tpu.memory_space<vmem>>, vector<2x256xf32>,
    return
  }
  func.func @transform_0(%arg0: i32) -> (i32, i32) {
    %c0_i32 = arith.constant 0 : i32
    %c0_i32_0 = arith.constant 0 : i32
    return %arg0, %c0_i32 : i32, i32
  }
  func.func @transform_1(%arg0: i32) -> (i32, i32) {
    %c0_i32 = arith.constant 0 : i32
    %c0_i32_0 = arith.constant 0 : i32
    %c0_i32_1 = arith.constant 0 : i32
    return %c0_i32, %c0_i32_0 : i32, i32
  }
  func.func @transform_2(%arg0: i32) -> (i32, i32) {
    %c0_i32 = arith.constant 0 : i32
    %c0_i32_0 = arith.constant 0 : i32
    return %arg0, %c0_i32 : i32, i32
  }
}

</mosaic_0001>

<llo_original>
// kernel: positional_encoding.1
$region0: #{positional_encoding.1}
  #allocation0 [shape = 'u32[]', space=smem, size = 0x4, offset = 0x4, fixed_abs, tag = 'smem constant byte address 0x4 - core index']
  #allocation1 [shape = 'u32[144,128]{1,0:T(1,128)}', space=vmem, size = 0x12000, scoped, tag = 'internal scratch']
  %s0 = inlined_call_operand.vmem [shape: f32[2,256], index: 0, kind: input, shape index: {}, may-alias: {0,2}]
  %s1 = inlined_call_operand.vmem [shape: f32[1,256], index: 1, kind: input, shape index: {}]
  %s2 = inlined_call_operand.vmem [shape: f32[2,256], index: 2, kind: output, shape index: {}, may-alias: {0,2}]
  %s3 = sld [smem:[#allocation0]]
  $region18: #{positional_encoding.1} parent=0
    _
  %s5 = ssub.s32 1, %s3
  %s6 = scalar_select 0, %s5, %s3
  // Predicated region
  $region2: #{positional_encoding.1} parent=0 // pred_check
    _
  $region3: #{positional_encoding.1} parent=0 // pred_check_branch
    %8 = sbr.rel (0) target = $region5
  $region4: #{positional_encoding.1} parent=0 // pred_region
    _
  $region5: #{positional_encoding.1} parent=0 // pred_fallthru
    _
  // Predicated region
  $region6: #{positional_encoding.1} parent=0 // pred_check
    _
  $region7: #{positional_encoding.1} parent=0 // pred_check_branch
    %10 = sbr.rel (0) target = $region9
  $region8: #{positional_encoding.1} parent=0 // pred_region
    _
  $region9: #{positional_encoding.1} parent=0 // pred_fallthru
    _
  %v11 = vld [vmem:[%s0] sm:$0xf]
  %v12 = vld [vmem:[%s1] sm:$0x3]
  %v14 = vlaneseq
  %v15 = vshrl.u32 %v14, 7
  %v16 = vsub.s32 0, %v15
  %v17 = vrot.slane %v12, %v16
  %v18 = vlaneseq
  %v19 = vshrl.u32 %v18, 7
  %v20 = vsub.s32 1, %v19
  %v21 = vrot.slane %v12, %v20
  %v22 = vcombine.low %v17, %v21
  %v24 = vunpack.c.l.s4 1983009808
  %v25 = vunpack.c.0.s8 %v24
  %v26 = vlaneseq
  %v27 = vshrl.u32 %v26, 7
  %v28 = vsub.s32 %v25, %v27
  %v29 = vrot.slane %v22, %v28
  %v31 = vadd.f32 %v11, %v29
  %32 = vst [vmem:[%s2] sm:$0xf] %v31
  // Predicated region
  $region10: #{positional_encoding.1} parent=0 // pred_check
    _
  $region11: #{positional_encoding.1} parent=0 // pred_check_branch
    %34 = sbr.rel (0) target = $region13
  $region12: #{positional_encoding.1} parent=0 // pred_region
    _
  $region13: #{positional_encoding.1} parent=0 // pred_fallthru
    _
  // Predicated region
  $region14: #{positional_encoding.1} parent=0 // pred_check
    _
  $region15: #{positional_encoding.1} parent=0 // pred_check_branch
    %36 = sbr.rel (0) target = $region17
  $region16: #{positional_encoding.1} parent=0 // pred_region
    _
  $region17: #{positional_encoding.1} parent=0 // pred_fallthru
    _

</llo_original>
